<compile_context>
chip_gen: v5e
topology: v5e:2x2
jax: 0.10.0
libtpu: 0.0.40
codegen_flags: <defaults>
</compile_context>

<pallas_src>
import jax
import jax.numpy as jnp
import numpy as np
from jax.experimental import pallas as pl
from jax.experimental.pallas import tpu as pltpu

C1, C2, O = 16, 36, 2        # conv1 / conv2 channels, fc outputs (fixed by Net01)
KH = KW = 3


# ----------------------------- parameter prep ------------------------------

def _conv_block_weight(w, w_in, sel):
    """(Cout,Cin,3,3) torch conv weight -> (3*w_in*Cin, len(sel)*Cout) matrix.

    Row index = kh*(w_in*Cin) + wi*Cin + ci  (kh-shifted input row, col wi, chan ci)
    Col index = p*Cout + co                  (p-th output column in `sel` order)
    Entry     = w[co, ci, kh, wi - sel[p]] when wi - sel[p] in {0,1,2}, else 0.
    Multiplying the lane-concatenated kh-shifted activation rows by this matrix
    performs the whole 3x3 valid conv (kh and kw folded in) for every output
    column in `sel` with a single matmul.
    """
    w = np.asarray(w, np.float32)
    cout, cin = w.shape[0], w.shape[1]
    m = np.zeros((KH * w_in * cin, len(sel) * cout), np.float32)
    for kh in range(KH):
        for p, wo in enumerate(sel):
            for kw in range(KW):
                wi = wo + kw
                r = kh * w_in * cin + wi * cin
                m[r:r + cin, p * cout:(p + 1) * cout] = w[:, :, kh, kw].T
    return jnp.asarray(m)


def prepare_params(tp, H, W):
    """PyTorch-layout params -> fused-kernel layout (host side, done once)."""
    Wp1 = (W - 2) // 2
    Wp2 = (Wp1 - 2) // 2
    Hp1 = (H - 2) // 2
    Hp2 = (Hp1 - 2) // 2
    # Column order: all even output cols first, then all odd ones; the kernel
    # max-reduces the two halves, which IS the 2x pool along W (bias is
    # per-channel/identical in both halves and ReLU is monotone, so it commutes).
    sel1 = [2 * p for p in range(Wp1)] + [2 * p + 1 for p in range(Wp1)]
    sel2 = [2 * p for p in range(Wp2)] + [2 * p + 1 for p in range(Wp2)]
    return {
        "w1": _conv_block_weight(tp["w1"], W, sel1),     # (3*W*Cin,  2*Wp1*C1)
        "b1": jnp.tile(tp["b1"], Wp1)[None, :],          # (1, Wp1*C1)
        "w2": _conv_block_weight(tp["w2"], Wp1, sel2),   # (3*Wp1*C1, 2*Wp2*C2)
        "b2": jnp.tile(tp["b2"], Wp2)[None, :],          # (1, Wp2*C2)
        "wf": tp["wf"].T / float(Hp2 * Wp2),             # (C2, O); GAP scale folded in
        "bf": tp["bf"][None, :],                          # (1, O)
    }


# ------------------------- fused forward (one kernel) -----------------------

def net01_forward(x_nchw, kp, *, num_blocks=None):
    B, Cin, H, W = x_nchw.shape
    assert H % 2 == 0, "aligned-rows layout assumes an even image height"
    if num_blocks is None:
        # 2 grid steps keeps both v7x TensorCores busy; larger batches get
        # stacked into the matmul M dimension inside each block.
        num_blocks = 2 if (B % 2 == 0 and B >= 2) else 1
    assert B % num_blocks == 0
    bblk = B // num_blocks

    Wp1 = (W - 2) // 2; half1 = Wp1 * C1
    Wp2 = (Wp1 - 2) // 2; half2 = Wp2 * C2
    Hp1 = (H - 2) // 2
    Hp2 = (Hp1 - 2) // 2
    H2 = H // 2                  # per-image rows after pool1 (last one garbage)

    Mb = bblk * H                # stacked rows per block
    M1 = Mb - 2                  # conv1 rows (valid + inter-image garbage)
    Mp = bblk * H2               # pool1 rows per block
    M2 = Mp - 2                  # conv2 rows

    # NCHW -> rows = (image, image-row) stacked, lanes = (col, chan).
    x2 = jnp.transpose(x_nchw, (0, 2, 3, 1)).reshape(B * H, W * Cin)

    def kernel(x_ref, w1_ref, b1_ref, w2_ref, b2_ref, wf_ref, bf_ref,
               o_ref, y1_scr, a2_scr):
        # ---- conv1 (+ W-pool + bias + relu): ONE matmul ---------------------
        a1 = jnp.concatenate([x_ref[pl.ds(kh, M1), :] for kh in range(KH)],
                             axis=1)                               # (M1, 3*W*Cin)
        y1 = jnp.dot(a1, w1_ref[...], preferred_element_type=jnp.float32)
        y1 = jnp.maximum(jnp.maximum(y1[:, :half1], y1[:, half1:])
                         + b1_ref[...], 0.0)                       # (M1, half1)

        # ---- pool1 along H: one dense store + two strided loads -------------
        y1_scr[pl.ds(0, M1), :] = y1
        y1_scr[pl.ds(M1, 2), :] = jnp.zeros((2, half1), jnp.float32)
        p1 = jnp.maximum(y1_scr[pl.ds(0, Mp, 2), :],
                         y1_scr[pl.ds(1, Mp, 2), :])               # (Mp, half1)

        # ---- conv2 (+ W-pool + bias + relu): ONE matmul ----------------------
        a2in = jnp.concatenate([p1[kh:kh + M2, :] for kh in range(KH)],
                               axis=1)                             # (M2, 3*half1)
        y2 = jnp.dot(a2in, w2_ref[...], preferred_element_type=jnp.float32)
        a2 = jnp.maximum(jnp.maximum(y2[:, :half2], y2[:, half2:])
                         + b2_ref[...], 0.0)                       # (M2, half2)

        # ---- pool2 along H + GAP + fc, batched over the whole block ---------
        a2_scr[pl.ds(0, M2), :] = a2
        s = jnp.zeros((bblk, half2), jnp.float32)
        for hp in range(Hp2):        # Hp2 == 2: strided row-pair maxes
            s = s + jnp.maximum(a2_scr[pl.ds(2 * hp, bblk, H2), :],
                                a2_scr[pl.ds(2 * hp + 1, bblk, H2), :])
        gap = jnp.zeros((bblk, C2), jnp.float32)
        for wp in range(Wp2):        # Wp2 == 2: sum the W positions (lane blocks)
            gap = gap + s[:, wp * C2:(wp + 1) * C2]
        # 1/(Hp2*Wp2) is pre-folded into wf; one tiny dot per block, (bblk,O) slab out.
        o_ref[0] = jnp.dot(gap, wf_ref[...],
                           preferred_element_type=jnp.float32) + bf_ref[...]

    def const(shape):
        return pl.BlockSpec(shape, lambda i: (0,) * len(shape))

    out = pl.pallas_call(
        kernel,
        out_shape=jax.ShapeDtypeStruct((num_blocks, bblk, O), jnp.float32),
        grid=(num_blocks,),
        in_specs=[
            pl.BlockSpec((Mb, W * Cin), lambda i: (i, 0)),   # one batch block / step
            const((KH * W * Cin, 2 * half1)),
            const((1, half1)),
            const((KH * half1, 2 * half2)),
            const((1, half2)),
            const((C2, O)),
            const((1, O)),
        ],
        out_specs=pl.BlockSpec((1, bblk, O), lambda i: (i, 0, 0)),
        scratch_shapes=[pltpu.VMEM((Mb, half1), jnp.float32),
                        pltpu.VMEM((Mp, half2), jnp.float32)],
        compiler_params=pltpu.CompilerParams(
            dimension_semantics=("parallel",)),
    )(x2, kp["w1"], kp["b1"], kp["w2"], kp["b2"], kp["wf"], kp["bf"])
    return out.reshape(B, O)


# --------------------------- pure-JAX reference -----------------------------

def _ref_maxpool(y):
    B, C, H, W = y.shape
    Hp, Wp = H // 2, W // 2
    y = y[:, :, :2 * Hp, :2 * Wp].reshape(B, C, Hp, 2, Wp, 2)
    return jnp.max(y, axis=(3, 5))


def reference_forward(x_nchw, tp):
    dn = ("NCHW", "OIHW", "NCHW")
    y = jax.lax.conv_general_dilated(x_nchw, tp["w1"], (1, 1), "VALID",
                                     dimension_numbers=dn)
    y = jax.nn.relu(y + tp["b1"][None, :, None, None])
    y = _ref_maxpool(y)
    y = jax.lax.conv_general_dilated(y, tp["w2"], (1, 1), "VALID",
                                     dimension_numbers=dn)
    y = jax.nn.relu(y + tp["b2"][None, :, None, None])
    y = _ref_maxpool(y)
    y = jnp.mean(y, axis=(2, 3))
    return y @ tp["wf"].T + tp["bf"]


# --------------------------------- main -------------------------------------

if __name__ == "__main__":
    key = jax.random.PRNGKey(0)
    kx, k1, k2, k3, k4, k5, k6 = jax.random.split(key, 7)

    # deterministic synthetic parameters (PyTorch layouts)
    tp = {
        "w1": jax.random.normal(k1, (16, 3, 3, 3), jnp.float32) * 0.1,   # (Cout,Cin,kh,kw)
        "b1": jax.random.normal(k2, (16,), jnp.float32) * 0.1,
        "w2": jax.random.normal(k3, (36, 16, 3, 3), jnp.float32) * 0.05,
        "b2": jax.random.normal(k4, (36,), jnp.float32) * 0.1,
        "wf": jax.random.normal(k5, (2, 36), jnp.float32) * 0.1,         # (out,in)
        "bf": jax.random.normal(k6, (2,), jnp.float32) * 0.1,
    }
    x = jax.random.normal(kx, (2, 3, 16, 16), dtype=jnp.float32)  # NCHW like PyTorch

    kp = prepare_params(tp, H=16, W=16)
    fwd = jax.jit(net01_forward)

    out = jax.block_until_ready(fwd(x, kp))
    ref = jax.block_until_ready(reference_forward(x, tp))

    assert out.shape == (2, 2), out.shape
    if not bool(jnp.allclose(out, ref, atol=1e-4, rtol=1e-4)):
        raise AssertionError(f"Pallas output mismatch:\n{out}\nvs reference\n{ref}")
    print("KERNEL_OK")
</pallas_src>

<mosaic_0001>
module attributes {stable_mosaic.version = 11 : i64} {
  func.func @kernel(%arg0: i32, %arg1: memref<16x48xf32, #tpu.memory_space<vmem>>, %arg2: memref<144x224xf32, #tpu.memory_space<vmem>>, %arg3: memref<1x112xf32, #tpu.memory_space<vmem>>, %arg4: memref<336x144xf32, #tpu.memory_space<vmem>>, %arg5: memref<1x72xf32, #tpu.memory_space<vmem>>, %arg6: memref<36x2xf32, #tpu.memory_space<vmem>>, %arg7: memref<1x2xf32, #tpu.memory_space<vmem>>, %arg8: memref<1x1x2xf32, #tpu.memory_space<vmem>>, %arg9: memref<16x112xf32, #tpu.memory_space<vmem>>, %arg10: memref<8x72xf32, #tpu.memory_space<vmem>>) attributes {dimension_semantics = [#tpu.dimension_semantics<parallel>], iteration_bounds = array<i64: 2>, scalar_prefetch = 0 : i64, scratch_operands = 2 : i64, tpu.core_type = #tpu.core_type<tc>, window_params = [{transform_indices = @transform_0, window_bounds = array<i64: 16, 48>}, {pipeline_mode = #tpu.pipeline_mode<synchronous>, transform_indices = @transform_1, window_bounds = array<i64: 144, 224>}, {pipeline_mode = #tpu.pipeline_mode<synchronous>, transform_indices = @transform_2, window_bounds = array<i64: 1, 112>}, {pipeline_mode = #tpu.pipeline_mode<synchronous>, transform_indices = @transform_3, window_bounds = array<i64: 336, 144>}, {pipeline_mode = #tpu.pipeline_mode<synchronous>, transform_indices = @transform_4, window_bounds = array<i64: 1, 72>}, {pipeline_mode = #tpu.pipeline_mode<synchronous>, transform_indices = @transform_5, window_bounds = array<i64: 36, 2>}, {pipeline_mode = #tpu.pipeline_mode<synchronous>, transform_indices = @transform_6, window_bounds = array<i64: 1, 2>}, {transform_indices = @transform_7, window_bounds = array<i64: 1, 1, 2>}]} {
    %c0 = arith.constant 0 : index
    %c0_0 = arith.constant 0 : index
    %0 = vector.load %arg1[%c0, %c0_0] : memref<16x48xf32, #tpu.memory_space<vmem>>, vector<14x48xf32>
    %c1 = arith.constant 1 : index
    %c0_1 = arith.constant 0 : index
    %1 = vector.load %arg1[%c1, %c0_1] : memref<16x48xf32, #tpu.memory_space<vmem>>, vector<14x48xf32>
    %c2 = arith.constant 2 : index
    %c0_2 = arith.constant 0 : index
    %2 = vector.load %arg1[%c2, %c0_2] : memref<16x48xf32, #tpu.memory_space<vmem>>, vector<14x48xf32>
    %3 = tpu.concatenate %0, %1, %2 in 1 : vector<14x48xf32>, vector<14x48xf32>, vector<14x48xf32> -> vector<14x144xf32>
    %c0_3 = arith.constant 0 : index
    %c0_4 = arith.constant 0 : index
    %4 = vector.load %arg2[%c0_3, %c0_4] : memref<144x224xf32, #tpu.memory_space<vmem>>, vector<144x224xf32>
    %cst = arith.constant dense<0.000000e+00> : vector<14x224xf32>
    %5 = tpu.matmul %3, %4, %cst {dimension_numbers = #tpu.dot_dimension_numbers<[1], [0], [0], [1], [0, 0, 1, 1], [], []>} : vector<14x144xf32>, vector<144x224xf32>, vector<14x224xf32> -> vector<14x224xf32>
    %6 = vector.extract_strided_slice %5 {offsets = [0, 0], sizes = [14, 112], strides = [1, 1]} : vector<14x224xf32> to vector<14x112xf32>
    %7 = vector.extract_strided_slice %5 {offsets = [0, 112], sizes = [14, 112], strides = [1, 1]} : vector<14x224xf32> to vector<14x112xf32>
    %8 = arith.maximumf %6, %7 : vector<14x112xf32>
    %c0_5 = arith.constant 0 : index
    %c0_6 = arith.constant 0 : index
    %9 = vector.load %arg3[%c0_5, %c0_6] : memref<1x112xf32, #tpu.memory_space<vmem>>, vector<1x112xf32>
    %10 = vector.broadcast %9 : vector<1x112xf32> to vector<14x112xf32>
    %11 = arith.addf %8, %10 : vector<14x112xf32>
    %cst_7 = arith.constant 0.000000e+00 : f32
    %12 = vector.broadcast %cst_7 : f32 to vector<14x112xf32>
    %13 = arith.maximumf %11, %12 : vector<14x112xf32>
    %c0_8 = arith.constant 0 : index
    %c0_9 = arith.constant 0 : index
    %14 = vector.load %arg9[%c0_8, %c0_9] : memref<16x112xf32, #tpu.memory_space<vmem>>, vector<14x112xf32>
    tpu.vector_store %arg9[%c0_8, %c0_9], %13 {strides = array<i32>} : memref<16x112xf32, #tpu.memory_space<vmem>>, vector<14x112xf32>,
    %cst_10 = arith.constant 0.000000e+00 : f32
    %15 = vector.broadcast %cst_10 : f32 to vector<2x112xf32>
    %c14 = arith.constant 14 : index
    %c0_11 = arith.constant 0 : index
    %16 = vector.load %arg9[%c14, %c0_11] : memref<16x112xf32, #tpu.memory_space<vmem>>, vector<2x112xf32>
    tpu.vector_store %arg9[%c14, %c0_11], %15 {strides = array<i32>} : memref<16x112xf32, #tpu.memory_space<vmem>>, vector<2x112xf32>,
    %c0_12 = arith.constant 0 : index
    %c0_13 = arith.constant 0 : index
    %17 = tpu.strided_load %arg9[%c0_12, %c0_13] {strides = array<i32: 2, 1>} : memref<16x112xf32, #tpu.memory_space<vmem>>, vector<8x112xf32>
    %c1_14 = arith.constant 1 : index
    %c0_15 = arith.constant 0 : index
    %18 = tpu.strided_load %arg9[%c1_14, %c0_15] {strides = array<i32: 2, 1>} : memref<16x112xf32, #tpu.memory_space<vmem>>, vector<8x112xf32>
    %19 = arith.maximumf %17, %18 : vector<8x112xf32>
    %20 = vector.extract_strided_slice %19 {offsets = [0, 0], sizes = [6, 112], strides = [1, 1]} : vector<8x112xf32> to vector<6x112xf32>
    %21 = vector.extract_strided_slice %19 {offsets = [1, 0], sizes = [6, 112], strides = [1, 1]} : vector<8x112xf32> to vector<6x112xf32>
    %22 = vector.extract_strided_slice %19 {offsets = [2, 0], sizes = [6, 112], strides = [1, 1]} : vector<8x112xf32> to vector<6x112xf32>
    %23 = tpu.concatenate %20, %21, %22 in 1 : vector<6x112xf32>, vector<6x112xf32>, vector<6x112xf32> -> vector<6x336xf32>
    %c0_16 = arith.constant 0 : index
    %c0_17 = arith.constant 0 : index
    %24 = vector.load %arg4[%c0_16, %c0_17] : memref<336x144xf32, #tpu.memory_space<vmem>>, vector<336x144xf32>
    %cst_18 = arith.constant dense<0.000000e+00> : vector<6x144xf32>
    %25 = tpu.matmul %23, %24, %cst_18 {dimension_numbers = #tpu.dot_dimension_numbers<[1], [0], [0], [1], [0, 0, 1, 1], [], []>} : vector<6x336xf32>, vector<336x144xf32>, vector<6x144xf32> -> vector<6x144xf32>
    %26 = vector.extract_strided_slice %25 {offsets = [0, 0], sizes = [6, 72], strides = [1, 1]} : vector<6x144xf32> to vector<6x72xf32>
    %27 = vector.extract_strided_slice %25 {offsets = [0, 72], sizes = [6, 72], strides = [1, 1]} : vector<6x144xf32> to vector<6x72xf32>
    %28 = arith.maximumf %26, %27 : vector<6x72xf32>
    %c0_19 = arith.constant 0 : index
    %c0_20 = arith.constant 0 : index
    %29 = vector.load %arg5[%c0_19, %c0_20] : memref<1x72xf32, #tpu.memory_space<vmem>>, vector<1x72xf32>
    %30 = vector.broadcast %29 : vector<1x72xf32> to vector<6x72xf32>
    %31 = arith.addf %28, %30 : vector<6x72xf32>
    %cst_21 = arith.constant 0.000000e+00 : f32
    %32 = vector.broadcast %cst_21 : f32 to vector<6x72xf32>
    %33 = arith.maximumf %31, %32 : vector<6x72xf32>
    %c0_22 = arith.constant 0 : index
    %c0_23 = arith.constant 0 : index
    %34 = vector.load %arg10[%c0_22, %c0_23] : memref<8x72xf32, #tpu.memory_space<vmem>>, vector<6x72xf32>
    tpu.vector_store %arg10[%c0_22, %c0_23], %33 {strides = array<i32>} : memref<8x72xf32, #tpu.memory_space<vmem>>, vector<6x72xf32>,
    %cst_24 = arith.constant 0.000000e+00 : f32
    %35 = vector.broadcast %cst_24 : f32 to vector<1x72xf32>
    %c0_25 = arith.constant 0 : index
    %c0_26 = arith.constant 0 : index
    %36 = tpu.strided_load %arg10[%c0_25, %c0_26] {strides = array<i32: 8, 1>} : memref<8x72xf32, #tpu.memory_space<vmem>>, vector<1x72xf32>
    %c1_27 = arith.constant 1 : index
    %c0_28 = arith.constant 0 : index
    %37 = tpu.strided_load %arg10[%c1_27, %c0_28] {strides = array<i32: 8, 1>} : memref<8x72xf32, #tpu.memory_space<vmem>>, vector<1x72xf32>
    %38 = arith.maximumf %36, %37 : vector<1x72xf32>
    %39 = arith.addf %35, %38 : vector<1x72xf32>
    %c2_29 = arith.constant 2 : index
    %c0_30 = arith.constant 0 : index
    %40 = tpu.strided_load %arg10[%c2_29, %c0_30] {strides = array<i32: 8, 1>} : memref<8x72xf32, #tpu.memory_space<vmem>>, vector<1x72xf32>
    %c3 = arith.constant 3 : index
    %c0_31 = arith.constant 0 : index
    %41 = tpu.strided_load %arg10[%c3, %c0_31] {strides = array<i32: 8, 1>} : memref<8x72xf32, #tpu.memory_space<vmem>>, vector<1x72xf32>
    %42 = arith.maximumf %40, %41 : vector<1x72xf32>
    %43 = arith.addf %39, %42 : vector<1x72xf32>
    %cst_32 = arith.constant 0.000000e+00 : f32
    %44 = vector.broadcast %cst_32 : f32 to vector<1x36xf32>
    %45 = vector.extract_strided_slice %43 {offsets = [0, 0], sizes = [1, 36], strides = [1, 1]} : vector<1x72xf32> to vector<1x36xf32>
    %46 = arith.addf %44, %45 : vector<1x36xf32>
    %47 = vector.extract_strided_slice %43 {offsets = [0, 36], sizes = [1, 36], strides = [1, 1]} : vector<1x72xf32> to vector<1x36xf32>
    %48 = arith.addf %46, %47 : vector<1x36xf32>
    %c0_33 = arith.constant 0 : index
    %c0_34 = arith.constant 0 : index
    %49 = vector.load %arg6[%c0_33, %c0_34] : memref<36x2xf32, #tpu.memory_space<vmem>>, vector<36x2xf32>
    %cst_35 = arith.constant dense<0.000000e+00> : vector<1x2xf32>
    %50 = tpu.matmul %48, %49, %cst_35 {dimension_numbers = #tpu.dot_dimension_numbers<[1], [0], [0], [1], [0, 0, 1, 1], [], []>} : vector<1x36xf32>, vector<36x2xf32>, vector<1x2xf32> -> vector<1x2xf32>
    %c0_36 = arith.constant 0 : index
    %c0_37 = arith.constant 0 : index
    %51 = vector.load %arg7[%c0_36, %c0_37] : memref<1x2xf32, #tpu.memory_space<vmem>>, vector<1x2xf32>
    %52 = arith.addf %50, %51 : vector<1x2xf32>
    %c0_38 = arith.constant 0 : index
    %c0_39 = arith.constant 0 : index
    %c0_40 = arith.constant 0 : index
    %53 = vector.load %arg8[%c0_38, %c0_39, %c0_40] : memref<1x1x2xf32, #tpu.memory_space<vmem>>, vector<1x1x2xf32>
    %54 = vector.shape_cast %53 : vector<1x1x2xf32> to vector<1x2xf32>
    %55 = vector.shape_cast %52 : vector<1x2xf32> to vector<1x1x2xf32>
    tpu.vector_store %arg8[%c0_38, %c0_39, %c0_40], %55 {strides = array<i32>} : memref<1x1x2xf32, #tpu.memory_space<vmem>>, vector<1x1x2xf32>,
    return
  }
  func.func @transform_0(%arg0: i32) -> (i32, i32) {
    %c0_i32 = arith.constant 0 : i32
    %c0_i32_0 = arith.constant 0 : i32
    return %arg0, %c0_i32 : i32, i32
  }
  func.func @transform_1(%arg0: i32) -> (i32, i32) {
    %c0_i32 = arith.constant 0 : i32
    %c0_i32_0 = arith.constant 0 : i32
    %c0_i32_1 = arith.constant 0 : i32
    return %c0_i32, %c0_i32_0 : i32, i32
  }
  func.func @transform_2(%arg0: i32) -> (i32, i32) {
    %c0_i32 = arith.constant 0 : i32
    %c0_i32_0 = arith.constant 0 : i32
    %c0_i32_1 = arith.constant 0 : i32
    return %c0_i32, %c0_i32_0 : i32, i32
  }
  func.func @transform_3(%arg0: i32) -> (i32, i32) {
    %c0_i32 = arith.constant 0 : i32
    %c0_i32_0 = arith.constant 0 : i32
    %c0_i32_1 = arith.constant 0 : i32
    return %c0_i32, %c0_i32_0 : i32, i32
  }
  func.func @transform_4(%arg0: i32) -> (i32, i32) {
    %c0_i32 = arith.constant 0 : i32
    %c0_i32_0 = arith.constant 0 : i32
    %c0_i32_1 = arith.constant 0 : i32
    return %c0_i32, %c0_i32_0 : i32, i32
  }
  func.func @transform_5(%arg0: i32) -> (i32, i32) {
    %c0_i32 = arith.constant 0 : i32
    %c0_i32_0 = arith.constant 0 : i32
    %c0_i32_1 = arith.constant 0 : i32
    return %c0_i32, %c0_i32_0 : i32, i32
  }
  func.func @transform_6(%arg0: i32) -> (i32, i32) {
    %c0_i32 = arith.constant 0 : i32
    %c0_i32_0 = arith.constant 0 : i32
    %c0_i32_1 = arith.constant 0 : i32
    return %c0_i32, %c0_i32_0 : i32, i32
  }
  func.func @transform_7(%arg0: i32) -> (i32, i32, i32) {
    %c0_i32 = arith.constant 0 : i32
    %c0_i32_0 = arith.constant 0 : i32
    %c0_i32_1 = arith.constant 0 : i32
    return %arg0, %c0_i32, %c0_i32_0 : i32, i32, i32
  }
}

</mosaic_0001>

<llo_original>
// kernel: net01_forward.1
$region0: #{net01_forward.1}
  #allocation0 [shape = 'u32[]', space=smem, size = 0x4, offset = 0x4, fixed_abs, tag = 'smem constant byte address 0x4 - core index']
  #allocation1 [shape = 'u32[72,128]{1,0:T(1,128)}', space=vmem, size = 0x9000, scoped, tag = 'internal scratch']
  #allocation2 [shape = 'f32[16,112]{1,0:T(8,128)}', space=vmem, size = 0x2000, scoped, tag = 'scratch operand']
  #allocation3 [shape = 'f32[8,72]{1,0:T(8,128)}', space=vmem, size = 0x1000, scoped, tag = 'scratch operand']
  %s0 = inlined_call_operand.vmem [shape: f32[32,48], index: 0, kind: input, shape index: {}]
  %s1 = inlined_call_operand.vmem [shape: f32[144,224], index: 1, kind: input, shape index: {}]
  %s2 = inlined_call_operand.vmem [shape: f32[1,112], index: 2, kind: input, shape index: {}]
  %s3 = inlined_call_operand.vmem [shape: f32[336,144], index: 3, kind: input, shape index: {}]
  %s4 = inlined_call_operand.vmem [shape: f32[1,72], index: 4, kind: input, shape index: {}]
  %s5 = inlined_call_operand.vmem [shape: f32[36,2], index: 5, kind: input, shape index: {}]
  %s6 = inlined_call_operand.vmem [shape: f32[1,2], index: 6, kind: input, shape index: {}]
  %s7 = inlined_call_operand.hbm [shape: f32[2,1,2], index: 7, kind: output, shape index: {}]
  %s8 = sld [smem:[#allocation0]]
  $region61: #{net01_forward.1} parent=0
    _
  %s10 = ssub.s32 1, %s8
  %s11 = scalar_select 0, %s10, %s8
  $region1: #{net01_forward.1} parent=0
    #allocation4 [shape = 'u8[1024]{0}', space=vmem, size = 0x400, scoped, tag = 'output window, operand 0']
    #allocation5 [shape = 's32[2]{0}', space=sflag, size = 0x8, scoped, tag = 'scoped memory for net01_forward.1']
    %12 = vsyncpa [#allocation5], 0
    %s13 = scalar_lea.sflag [#allocation5], 1
    %14 = vsyncpa %s13, 0
    loop: start=0, step=1, limit=4
    $region2: #{net01_forward.1} parent=1 // loop_pre_header
      _
    $region3: #{net01_forward.1} parent=1 // loop_header
      %s16 = sphi 0, %s20
      %p17 = scmp.ge.s32.totalorder %s16, 4
      %s26 = sphi 0, %s28
      %s29 = sphi 0, %s26
      %s30 = sphi 0, %s29
      %s46 = sphi 0, %s30
      %s50 = sphi 0, %s50
      %s52 = sphi 0, %s50
      %s53 = sphi 0, %s52
      %s67 = sphi 0, %s53
      %s71 = sphi 0, %s71
      %s73 = sphi 0, %s71
      %s74 = sphi 0, %s73
      %s88 = sphi 0, %s74
      %s92 = sphi 0, %s92
      %s94 = sphi 0, %s92
      %s95 = sphi 0, %s94
      %s109 = sphi 0, %s95
      %s113 = sphi 0, %s113
      %s115 = sphi 0, %s113
      %s116 = sphi 0, %s115
      %s130 = sphi 0, %s116
      %s134 = sphi 0, %s134
      %s136 = sphi 0, %s134
      %s137 = sphi 0, %s136
      %s151 = sphi 0, %s137
      %s155 = sphi 0, %s155
      %s157 = sphi 0, %s155
      %s158 = sphi 0, %s157
      %s172 = sphi 0, %s158
      %s178 = sphi 0, %s180
      %s181 = sphi 0, %s178
      %s182 = sphi 0, %s181
      %s198 = sphi 0, %s182
    $region4: #{net01_forward.1} parent=1 // loop_header_branch
      %19 = sbr.rel (%p17) target = $region8
    $region5: #{net01_forward.1} parent=1 // loop_body
      %s21 = ssub.s32 %s16, 1
      %s22 = ssub.s32 %s16, 2
      %s23 = sadd.s32 %s16, 1
      %s24 = ssub.s32 %s16, %s23
      %p25 = scmp.eq.s32.totalorder %s24, 0
      %s27 = sadd.s32 %s26, 1
      %s28 = scalar_select %p25, %s26, %s27
      %p31 = pneg %p25
      %p32 = scmp.eq.s32.totalorder %s16, 1
      %p33 = por %p31, %p32
      %p34 = scmp.ne.s32.totalorder %s26, %s29
      %p35 = scmp.eq.s32.totalorder %s16, 0
      %p36 = por %p34, %p35
      %p37 = scmp.ne.s32.totalorder %s26, %s29
      %p38 = scmp.eq.s32.totalorder %s21, 1
      %p39 = por %p37, %p38
      %p40 = scmp.ne.s32.totalorder %s29, %s30
      %p41 = scmp.eq.s32.totalorder %s21, 0
      %p42 = por %p40, %p41
      %p43 = scmp.ne.s32.totalorder %s29, %s30
      %p44 = scmp.eq.s32.totalorder %s22, 1
      %p45 = por %p43, %p44
      %p47 = scmp.ne.s32.totalorder %s30, %s46
      %p48 = scmp.eq.s32.totalorder %s22, 0
      %p49 = por %p47, %p48
      %s51 = sadd.s32 %s50, 1
      %p54 = scmp.eq.s32.totalorder %s16, 1
      %p55 = scmp.ne.s32.totalorder %s50, %s52
      %p56 = scmp.eq.s32.totalorder %s16, 0
      %p57 = por %p55, %p56
      %p58 = scmp.ne.s32.totalorder %s50, %s52
      %p59 = scmp.eq.s32.totalorder %s21, 1
      %p60 = por %p58, %p59
      %p61 = scmp.ne.s32.totalorder %s52, %s53
      %p62 = scmp.eq.s32.totalorder %s21, 0
      %p63 = por %p61, %p62
      %p64 = scmp.ne.s32.totalorder %s52, %s53
      %p65 = scmp.eq.s32.totalorder %s22, 1
      %p66 = por %p64, %p65
      %p68 = scmp.ne.s32.totalorder %s53, %s67
      %p69 = scmp.eq.s32.totalorder %s22, 0
      %p70 = por %p68, %p69
      %s72 = sadd.s32 %s71, 1
      %p75 = scmp.eq.s32.totalorder %s16, 1
      %p76 = scmp.ne.s32.totalorder %s71, %s73
      %p77 = scmp.eq.s32.totalorder %s16, 0
      %p78 = por %p76, %p77
      %p79 = scmp.ne.s32.totalorder %s71, %s73
      %p80 = scmp.eq.s32.totalorder %s21, 1
      %p81 = por %p79, %p80
      %p82 = scmp.ne.s32.totalorder %s73, %s74
      %p83 = scmp.eq.s32.totalorder %s21, 0
      %p84 = por %p82, %p83
      %p85 = scmp.ne.s32.totalorder %s73, %s74
      %p86 = scmp.eq.s32.totalorder %s22, 1
      %p87 = por %p85, %p86
      %p89 = scmp.ne.s32.totalorder %s74, %s88
      %p90 = scmp.eq.s32.totalorder %s22, 0
      %p91 = por %p89, %p90
      %s93 = sadd.s32 %s92, 1
      %p96 = scmp.eq.s32.totalorder %s16, 1
      %p97 = scmp.ne.s32.totalorder %s92, %s94
      %p98 = scmp.eq.s32.totalorder %s16, 0
      %p99 = por %p97, %p98
      %p100 = scmp.ne.s32.totalorder %s92, %s94
      %p101 = scmp.eq.s32.totalorder %s21, 1
      %p102 = por %p100, %p101
      %p103 = scmp.ne.s32.totalorder %s94, %s95
      %p104 = scmp.eq.s32.totalorder %s21, 0
      %p105 = por %p103, %p104
      %p106 = scmp.ne.s32.totalorder %s94, %s95
      %p107 = scmp.eq.s32.totalorder %s22, 1
      %p108 = por %p106, %p107
      %p110 = scmp.ne.s32.totalorder %s95, %s109
      %p111 = scmp.eq.s32.totalorder %s22, 0
      %p112 = por %p110, %p111
      %s114 = sadd.s32 %s113, 1
      %p117 = scmp.eq.s32.totalorder %s16, 1
      %p118 = scmp.ne.s32.totalorder %s113, %s115
      %p119 = scmp.eq.s32.totalorder %s16, 0
      %p120 = por %p118, %p119
      %p121 = scmp.ne.s32.totalorder %s113, %s115
      %p122 = scmp.eq.s32.totalorder %s21, 1
      %p123 = por %p121, %p122
      %p124 = scmp.ne.s32.totalorder %s115, %s116
      %p125 = scmp.eq.s32.totalorder %s21, 0
      %p126 = por %p124, %p125
      %p127 = scmp.ne.s32.totalorder %s115, %s116
      %p128 = scmp.eq.s32.totalorder %s22, 1
      %p129 = por %p127, %p128
      %p131 = scmp.ne.s32.totalorder %s116, %s130
      %p132 = scmp.eq.s32.totalorder %s22, 0
      %p133 = por %p131, %p132
      %s135 = sadd.s32 %s134, 1
      %p138 = scmp.eq.s32.totalorder %s16, 1
      %p139 = scmp.ne.s32.totalorder %s134, %s136
      %p140 = scmp.eq.s32.totalorder %s16, 0
      %p141 = por %p139, %p140
      %p142 = scmp.ne.s32.totalorder %s134, %s136
      %p143 = scmp.eq.s32.totalorder %s21, 1
      %p144 = por %p142, %p143
      %p145 = scmp.ne.s32.totalorder %s136, %s137
      %p146 = scmp.eq.s32.totalorder %s21, 0
      %p147 = por %p145, %p146
      %p148 = scmp.ne.s32.totalorder %s136, %s137
      %p149 = scmp.eq.s32.totalorder %s22, 1
      %p150 = por %p148, %p149
      %p152 = scmp.ne.s32.totalorder %s137, %s151
      %p153 = scmp.eq.s32.totalorder %s22, 0
      %p154 = por %p152, %p153
      %s156 = sadd.s32 %s155, 1
      %p159 = scmp.eq.s32.totalorder %s16, 1
      %p160 = scmp.ne.s32.totalorder %s155, %s157
      %p161 = scmp.eq.s32.totalorder %s16, 0
      %p162 = por %p160, %p161
      %p163 = scmp.ne.s32.totalorder %s155, %s157
      %p164 = scmp.eq.s32.totalorder %s21, 1
      %p165 = por %p163, %p164
      %p166 = scmp.ne.s32.totalorder %s157, %s158
      %p167 = scmp.eq.s32.totalorder %s21, 0
      %p168 = por %p166, %p167
      %p169 = scmp.ne.s32.totalorder %s157, %s158
      %p170 = scmp.eq.s32.totalorder %s22, 1
      %p171 = por %p169, %p170
      %p173 = scmp.ne.s32.totalorder %s158, %s172
      %p174 = scmp.eq.s32.totalorder %s22, 0
      %p175 = por %p173, %p174
      %s176 = ssub.s32 %s16, %s23
      %p177 = scmp.eq.s32.totalorder %s176, 0
      %s179 = sadd.s32 %s178, 1
      %s180 = scalar_select %p177, %s178, %s179
      %p183 = pneg %p177
      %p184 = scmp.eq.s32.totalorder %s16, 1
      %p185 = por %p183, %p184
      %p186 = scmp.ne.s32.totalorder %s178, %s181
      %p187 = scmp.eq.s32.totalorder %s16, 0
      %p188 = por %p186, %p187
      %p189 = scmp.ne.s32.totalorder %s178, %s181
      %p190 = scmp.eq.s32.totalorder %s21, 1
      %p191 = por %p189, %p190
      %p192 = scmp.ne.s32.totalorder %s181, %s182
      %p193 = scmp.eq.s32.totalorder %s21, 0
      %p194 = por %p192, %p193
      %p195 = scmp.ne.s32.totalorder %s181, %s182
      %p196 = scmp.eq.s32.totalorder %s22, 1
      %p197 = por %p195, %p196
      %p199 = scmp.ne.s32.totalorder %s182, %s198
      %p200 = scmp.eq.s32.totalorder %s22, 0
      %p201 = por %p199, %p200
      %p202 = scmp.le.s32.totalorder 1, %s16
      %p203 = scmp.lt.s32.totalorder %s16, 3
      %p204 = pnand %p202, %p203
      %p205 = pneg %p204
      // Predicated region
      $region9: #{net01_forward.1} parent=5 // pred_check
        _
      $region10: #{net01_forward.1} parent=5 // pred_check_branch
        %207 = sbr.rel (%p204) target = $region12
      $region11: #{net01_forward.1} parent=5 // pred_region
        %s208 = ssub.s32 %s16, 1
        // Predicated region
        $region13: #{net01_forward.1} parent=11 // pred_check
          %p209 = pneg %p63
        $region14: #{net01_forward.1} parent=11 // pred_check_branch
          %211 = sbr.rel (%p209) target = $region16
        $region15: #{net01_forward.1} parent=11 // pred_region
          _
        $region16: #{net01_forward.1} parent=11 // pred_fallthru
          _
        // Predicated region
        $region17: #{net01_forward.1} parent=11 // pred_check
          %p212 = pneg %p84
        $region18: #{net01_forward.1} parent=11 // pred_check_branch
          %214 = sbr.rel (%p212) target = $region20
        $region19: #{net01_forward.1} parent=11 // pred_region
          _
        $region20: #{net01_forward.1} parent=11 // pred_fallthru
          _
        // Predicated region
        $region21: #{net01_forward.1} parent=11 // pred_check
          %p215 = pneg %p105
        $region22: #{net01_forward.1} parent=11 // pred_check_branch
          %217 = sbr.rel (%p215) target = $region24
        $region23: #{net01_forward.1} parent=11 // pred_region
          _
        $region24: #{net01_forward.1} parent=11 // pred_fallthru
          _
        // Predicated region
        $region25: #{net01_forward.1} parent=11 // pred_check
          %p218 = pneg %p126
        $region26: #{net01_forward.1} parent=11 // pred_check_branch
          %220 = sbr.rel (%p218) target = $region28
        $region27: #{net01_forward.1} parent=11 // pred_region
          _
        $region28: #{net01_forward.1} parent=11 // pred_fallthru
          _
        // Predicated region
        $region29: #{net01_forward.1} parent=11 // pred_check
          %p221 = pneg %p147
        $region30: #{net01_forward.1} parent=11 // pred_check_branch
          %223 = sbr.rel (%p221) target = $region32
        $region31: #{net01_forward.1} parent=11 // pred_region
          _
        $region32: #{net01_forward.1} parent=11 // pred_fallthru
          _
        // Predicated region
        $region33: #{net01_forward.1} parent=11 // pred_check
          %p224 = pneg %p168
        $region34: #{net01_forward.1} parent=11 // pred_check_branch
          %226 = sbr.rel (%p224) target = $region36
        $region35: #{net01_forward.1} parent=11 // pred_region
          _
        $region36: #{net01_forward.1} parent=11 // pred_fallthru
          _
      $region12: #{net01_forward.1} parent=5 // pred_fallthru
        _
      %p227 = scmp.lt.s32.totalorder %s16, 2
      // Predicated region
      $region37: #{net01_forward.1} parent=5 // pred_check
        %p228 = pneg %p227
      $region38: #{net01_forward.1} parent=5 // pred_check_branch
        %230 = sbr.rel (%p228) target = $region40
      $region39: #{net01_forward.1} parent=5 // pred_region
        // Predicated region
        $region41: #{net01_forward.1} parent=39 // pred_check
          %p231 = pneg %p36
        $region42: #{net01_forward.1} parent=39 // pred_check_branch
          %233 = sbr.rel (%p231) target = $region44
        $region43: #{net01_forward.1} parent=39 // pred_region
          %s234 = smul.u32 2, %s16
          %p235 = scmp.lt.s32.totalorder %s234, 3
          %s236 = scalar_select %p235, %s234, 3
          %s237 = smul.addr %s236, 8
          %s238 = scalar_lea.vmem %s0, %s237
          %s239 = smul.u32 2, %s16
        $region44: #{net01_forward.1} parent=39 // pred_fallthru
          _
      $region40: #{net01_forward.1} parent=5 // pred_fallthru
        _
      %p240 = scmp.le.s32.totalorder 1, %s16
      %p241 = scmp.lt.s32.totalorder %s16, 3
      %p242 = pnand %p240, %p241
      %p243 = pneg %p242
      // Predicated region
      $region45: #{net01_forward.1} parent=5 // pred_check
        _
      $region46: #{net01_forward.1} parent=5 // pred_check_branch
        %245 = sbr.rel (%p242) target = $region48
      $region47: #{net01_forward.1} parent=5 // pred_region
        %s246 = ssub.s32 %s16, 1
        %s247 = smul.u32 2, %s21
        %p248 = scmp.lt.s32.totalorder %s247, 3
        %s249 = scalar_select %p248, %s247, 3
        %s250 = smul.addr %s249, 8
        %s251 = scalar_lea.vmem %s0, %s250
        %p252 = pneg %p42
        %p253 = pneg %p39
        %p254 = pneg %p63
        %p255 = pneg %p60
        %p256 = pneg %p84
        %p257 = pneg %p81
        %p258 = pneg %p105
        %p259 = pneg %p102
        %p260 = pneg %p126
        %p261 = pneg %p123
        %p262 = pneg %p147
        %p263 = pneg %p144
        %p264 = pneg %p168
        %p265 = pneg %p165
        %p266 = pneg %p194
        %p267 = pneg %p191
        %s268 = sand.u32 %s181, 1
        %s269 = scalar_lea.sflag [#allocation5], %s268
        %s270 = sand.u32 %s181, 1
        %s271 = scalar_lea.vmem [#allocation4], %s270
        %s272 = smul.u32 2, %s21
        %p273 = scmp.lt.s32.totalorder %s272, 3
        %s274 = scalar_select %p273, %s272, 3
        %s275 = smul.addr %s274, 8
        %s276 = scalar_lea.vmem %s0, %s275
        %s277 = smul.u32 2, %s21
        %v278 = vld [vmem:[%s276] sm:$0xff]
        %v279 = vld [vmem:[%s276 + $0x8] sm:$0x3f]
        %v280 = vld [vmem:[%s276 + $0x1] sm:$0xff]
        %v281 = vld [vmem:[%s276 + $0x9] sm:$0x3f]
        %v282 = vld [vmem:[%s276 + $0x2] sm:$0xff]
        %v283 = vld [vmem:[%s276 + $0xa] sm:$0x3f]
        %286 = vrot.lane.b32.xlu0 %v280, 48
        %v287 = vpop.permute.xlu0 %286
        %288 = vrot.lane.b32.xlu0 %v281, 48
        %v289 = vpop.permute.xlu0 %288
        %294 = vrot.lane.b32.xlu0 %v282, 96
        %v295 = vpop.permute.xlu0 %294
        %296 = vrot.lane.b32.xlu0 %v283, 96
        %v297 = vpop.permute.xlu0 %296
        %vm300 = vcmask 392192
        %v301 = vsel %vm300, %v278, %v287
        %v302 = vsel %vm300, %v279, %v289
        %vm303 = vcmask 785408
        %v304 = vsel %vm303, %v301, %v295
        %v305 = vsel %vm303, %v302, %v297
        %v306 = vld [vmem:[%s1] sm:$0xff]
        %v307 = vld [vmem:[%s1 + $0x8] sm:$0xff]
        %v308 = vld [vmem:[%s1 + $0x10] sm:$0xff]
        %v309 = vld [vmem:[%s1 + $0x18] sm:$0xff]
        %v310 = vld [vmem:[%s1 + $0x20] sm:$0xff]
        %v311 = vld [vmem:[%s1 + $0x28] sm:$0xff]
        %v312 = vld [vmem:[%s1 + $0x30] sm:$0xff]
        %v313 = vld [vmem:[%s1 + $0x38] sm:$0xff]
        %v314 = vld [vmem:[%s1 + $0x40] sm:$0xff]
        %v315 = vld [vmem:[%s1 + $0x48] sm:$0xff]
        %v316 = vld [vmem:[%s1 + $0x50] sm:$0xff]
        %v317 = vld [vmem:[%s1 + $0x58] sm:$0xff]
        %v318 = vld [vmem:[%s1 + $0x60] sm:$0xff]
        %v319 = vld [vmem:[%s1 + $0x68] sm:$0xff]
        %v320 = vld [vmem:[%s1 + $0x70] sm:$0xff]
        %v321 = vld [vmem:[%s1 + $0x78] sm:$0xff]
        %v322 = vld [vmem:[%s1 + $0x80] sm:$0xff]
        %v323 = vld [vmem:[%s1 + $0x88] sm:$0xff]
        %v324 = vld [vmem:[%s1 + $0x90] sm:$0xff]
        %v325 = vld [vmem:[%s1 + $0x98] sm:$0xff]
        %v326 = vld [vmem:[%s1 + $0xa0] sm:$0xff]
        %v327 = vld [vmem:[%s1 + $0xa8] sm:$0xff]
        %v328 = vld [vmem:[%s1 + $0xb0] sm:$0xff]
        %v329 = vld [vmem:[%s1 + $0xb8] sm:$0xff]
        %v330 = vld [vmem:[%s1 + $0xc0] sm:$0xff]
        %v331 = vld [vmem:[%s1 + $0xc8] sm:$0xff]
        %v332 = vld [vmem:[%s1 + $0xd0] sm:$0xff]
        %v333 = vld [vmem:[%s1 + $0xd8] sm:$0xff]
        %v334 = vld [vmem:[%s1 + $0xe0] sm:$0xff]
        %v335 = vld [vmem:[%s1 + $0xe8] sm:$0xff]
        %v336 = vld [vmem:[%s1 + $0xf0] sm:$0xff]
        %v337 = vld [vmem:[%s1 + $0xf8] sm:$0xff]
        %v338 = vld [vmem:[%s1 + $0x100] sm:$0xff]
        %v339 = vld [vmem:[%s1 + $0x108] sm:$0xff]
        %v340 = vld [vmem:[%s1 + $0x110] sm:$0xff]
        %v341 = vld [vmem:[%s1 + $0x118] sm:$0xff]
        %vm342 = vcmask 130048
        %v343 = vsel %vm342, %v295, 0
        %v345 = vsel %vm342, %v297, 0
        %347 = vmatpush.msra.mxu0 %v336
        %348 = vmatpush.msra.mxu0 %v334
        %349 = vmatpush.msra.mxu0 %v332
        %350 = vmatpush.msra.mxu0 %v330
        %351 = vmatpush.msra.mxu0 %v328
        %352 = vmatpush.msra.mxu0 %v326
        %353 = vmatpush.msra.mxu0 %v324
        %354 = vmatpush.msra.mxu0 %v322
        %355 = vmatpush.msra.mxu0 %v320
        %356 = vmatpush.msra.mxu0 %v318
        %357 = vmatpush.msra.mxu0 %v316
        %358 = vmatpush.msra.mxu0 %v314
        %359 = vmatpush.msra.mxu0 %v312
        %360 = vmatpush.msra.mxu0 %v310
        %361 = vmatpush.msra.mxu0 %v308
        %362 = vmatpush.msra.mxu0 %v306
        %363 = vmatmul.f32.gmra.mxu0 %v304
        %v364 = vpop.f32.mrf.mxu0
        %v365 = vadd.f32 0.0, %v364
        %366 = vmatmul.f32.gmra.mxu0 %v305
        %v367 = vpop.f32.mrf.mxu0
        %v368 = vadd.f32 0.0, %v367
        %369 = vdwg.mxu0
        %370 = vmatpush.msra.mxu0 0.0
        %371 = vmatpush.msra.mxu0 0.0
        %372 = vmatpush.msra.mxu0 0.0
        %373 = vmatpush.msra.mxu0 0.0
        %374 = vmatpush.msra.mxu0 0.0
        %375 = vmatpush.msra.mxu0 0.0
        %376 = vmatpush.msra.mxu0 0.0
        %377 = vmatpush.msra.mxu0 0.0
        %378 = vmatpush.msra.mxu0 0.0
        %379 = vmatpush.msra.mxu0 0.0
        %380 = vmatpush.msra.mxu0 0.0
        %381 = vmatpush.msra.mxu0 0.0
        %382 = vmatpush.msra.mxu0 0.0
        %383 = vmatpush.msra.mxu0 0.0
        %384 = vmatpush.msra.mxu0 %v340
        %385 = vmatpush.msra.mxu0 %v338
        %386 = vmatmul.f32.gmra.mxu0 %v343
        %v387 = vpop.f32.mrf.mxu0
        %v388 = vadd.f32 %v365, %v387
        %389 = vmatmul.f32.gmra.mxu0 %v345
        %v390 = vpop.f32.mrf.mxu0
        %v391 = vadd.f32 %v368, %v390
        %392 = vdwg.mxu0
        %393 = vmatpush.msra.mxu0 %v337
        %394 = vmatpush.msra.mxu0 %v335
        %395 = vmatpush.msra.mxu0 %v333
        %396 = vmatpush.msra.mxu0 %v331
        %397 = vmatpush.msra.mxu0 %v329
        %398 = vmatpush.msra.mxu0 %v327
        %399 = vmatpush.msra.mxu0 %v325
        %400 = vmatpush.msra.mxu0 %v323
        %401 = vmatpush.msra.mxu0 %v321
        %402 = vmatpush.msra.mxu0 %v319
        %403 = vmatpush.msra.mxu0 %v317
        %404 = vmatpush.msra.mxu0 %v315
        %405 = vmatpush.msra.mxu0 %v313
        %406 = vmatpush.msra.mxu0 %v311
        %407 = vmatpush.msra.mxu0 %v309
        %408 = vmatpush.msra.mxu0 %v307
        %409 = vmatmul.f32.gmra.mxu0 %v304
        %v410 = vpop.f32.mrf.mxu0
        %v411 = vadd.f32 0.0, %v410
        %412 = vmatmul.f32.gmra.mxu0 %v305
        %v413 = vpop.f32.mrf.mxu0
        %v414 = vadd.f32 0.0, %v413
        %415 = vdwg.mxu0
        %416 = vmatpush.msra.mxu0 0.0
        %417 = vmatpush.msra.mxu0 0.0
        %418 = vmatpush.msra.mxu0 0.0
        %419 = vmatpush.msra.mxu0 0.0
        %420 = vmatpush.msra.mxu0 0.0
        %421 = vmatpush.msra.mxu0 0.0
        %422 = vmatpush.msra.mxu0 0.0
        %423 = vmatpush.msra.mxu0 0.0
        %424 = vmatpush.msra.mxu0 0.0
        %425 = vmatpush.msra.mxu0 0.0
        %426 = vmatpush.msra.mxu0 0.0
        %427 = vmatpush.msra.mxu0 0.0
        %428 = vmatpush.msra.mxu0 0.0
        %429 = vmatpush.msra.mxu0 0.0
        %430 = vmatpush.msra.mxu0 %v341
        %431 = vmatpush.msra.mxu0 %v339
        %432 = vmatmul.f32.gmra.mxu0 %v343
        %v433 = vpop.f32.mrf.mxu0
        %v434 = vadd.f32 %v411, %v433
        %435 = vmatmul.f32.gmra.mxu0 %v345
        %v436 = vpop.f32.mrf.mxu0
        %v437 = vadd.f32 %v414, %v436
        %438 = vdwg.mxu0
        %443 = vrot.lane.b32.xlu0 %v388, 16
        %v444 = vpop.permute.xlu0 %443
        %445 = vrot.lane.b32.xlu0 %v434, 16
        %v446 = vpop.permute.xlu0 %445
        %447 = vrot.lane.b32.xlu0 %v391, 16
        %v448 = vpop.permute.xlu0 %447
        %449 = vrot.lane.b32.xlu0 %v437, 16
        %v450 = vpop.permute.xlu0 %449
        %v451 = vsel %vm342, %v444, %v446
        %v452 = vsel %vm342, %v448, %v450
        %v455 = vmax.f32 %v388, %v451
        %v456 = vmax.f32 %v391, %v452
        %v457 = vld [vmem:[%s2] sm:$0x1]
        %v459 = vperm.slane %v457, 0
        %v461 = vadd.f32 %v455, %v459
        %v462 = vadd.f32 %v456, %v459
        %v463 = vmax.f32 %v461, 0.0
        %v464 = vmax.f32 %v462, 0.0
        %vm465 = vcmask 916480
        %466 = vst.msk [vmem:[#allocation2] sm:$0xff] %vm465, %v463
        %vm467 = vcmask 914432
        %468 = vst.msk [vmem:[#allocation2 + $0x8] sm:$0x3f] %vm467, %v464
        %vm469 = vcmask 910336
        %470 = vst.msk [vmem:[#allocation2 + $0xe] sm:$0x3] %vm469, 0.0
        %v471 = vld [vmem:[#allocation2] ss:$2 sm:$0xff]
        %s472 = scalar_lea.vmem [#allocation2], 1
        %v473 = vld [vmem:[%s472] ss:$2 sm:$0xff]
        %v474 = vmax.f32 %v471, %v473
        %v476 = vrot.slane %v474, 1
        %477 = vrot.lane.b32.xlu0 %v476, 112
        %v478 = vpop.permute.xlu0 %477
        %v480 = vrot.slane %v474, 2
        %481 = vrot.lane.b32.xlu0 %v480, 96
        %v482 = vpop.permute.xlu0 %481
        %v484 = vsel %vm465, %v474, %v478
        %v485 = vsel %vm303, %v478, %v482
        %v486 = vld [vmem:[%s3] sm:$0xff]
        %v487 = vld [vmem:[%s3 + $0x8] sm:$0xff]
        %v488 = vld [vmem:[%s3 + $0x10] sm:$0xff]
        %v489 = vld [vmem:[%s3 + $0x18] sm:$0xff]
        %v490 = vld [vmem:[%s3 + $0x20] sm:$0xff]
        %v491 = vld [vmem:[%s3 + $0x28] sm:$0xff]
        %v492 = vld [vmem:[%s3 + $0x30] sm:$0xff]
        %v493 = vld [vmem:[%s3 + $0x38] sm:$0xff]
        %v494 = vld [vmem:[%s3 + $0x40] sm:$0xff]
        %v495 = vld [vmem:[%s3 + $0x48] sm:$0xff]
        %v496 = vld [vmem:[%s3 + $0x50] sm:$0xff]
        %v497 = vld [vmem:[%s3 + $0x58] sm:$0xff]
        %v498 = vld [vmem:[%s3 + $0x60] sm:$0xff]
        %v499 = vld [vmem:[%s3 + $0x68] sm:$0xff]
        %v500 = vld [vmem:[%s3 + $0x70] sm:$0xff]
        %v501 = vld [vmem:[%s3 + $0x78] sm:$0xff]
        %v502 = vld [vmem:[%s3 + $0x80] sm:$0xff]
        %v503 = vld [vmem:[%s3 + $0x88] sm:$0xff]
        %v504 = vld [vmem:[%s3 + $0x90] sm:$0xff]
        %v505 = vld [vmem:[%s3 + $0x98] sm:$0xff]
        %v506 = vld [vmem:[%s3 + $0xa0] sm:$0xff]
        %v507 = vld [vmem:[%s3 + $0xa8] sm:$0xff]
        %v508 = vld [vmem:[%s3 + $0xb0] sm:$0xff]
        %v509 = vld [vmem:[%s3 + $0xb8] sm:$0xff]
        %v510 = vld [vmem:[%s3 + $0xc0] sm:$0xff]
        %v511 = vld [vmem:[%s3 + $0xc8] sm:$0xff]
        %v512 = vld [vmem:[%s3 + $0xd0] sm:$0xff]
        %v513 = vld [vmem:[%s3 + $0xd8] sm:$0xff]
        %v514 = vld [vmem:[%s3 + $0xe0] sm:$0xff]
        %v515 = vld [vmem:[%s3 + $0xe8] sm:$0xff]
        %v516 = vld [vmem:[%s3 + $0xf0] sm:$0xff]
        %v517 = vld [vmem:[%s3 + $0xf8] sm:$0xff]
        %v518 = vld [vmem:[%s3 + $0x100] sm:$0xff]
        %v519 = vld [vmem:[%s3 + $0x108] sm:$0xff]
        %v520 = vld [vmem:[%s3 + $0x110] sm:$0xff]
        %v521 = vld [vmem:[%s3 + $0x118] sm:$0xff]
        %v522 = vld [vmem:[%s3 + $0x120] sm:$0xff]
        %v523 = vld [vmem:[%s3 + $0x128] sm:$0xff]
        %v524 = vld [vmem:[%s3 + $0x130] sm:$0xff]
        %v525 = vld [vmem:[%s3 + $0x138] sm:$0xff]
        %v526 = vld [vmem:[%s3 + $0x140] sm:$0xff]
        %v527 = vld [vmem:[%s3 + $0x148] sm:$0xff]
        %v528 = vld [vmem:[%s3 + $0x150] sm:$0xff]
        %v529 = vld [vmem:[%s3 + $0x158] sm:$0xff]
        %v530 = vld [vmem:[%s3 + $0x160] sm:$0xff]
        %v531 = vld [vmem:[%s3 + $0x168] sm:$0xff]
        %v532 = vld [vmem:[%s3 + $0x170] sm:$0xff]
        %v533 = vld [vmem:[%s3 + $0x178] sm:$0xff]
        %v534 = vld [vmem:[%s3 + $0x180] sm:$0xff]
        %v535 = vld [vmem:[%s3 + $0x188] sm:$0xff]
        %v536 = vld [vmem:[%s3 + $0x190] sm:$0xff]
        %v537 = vld [vmem:[%s3 + $0x198] sm:$0xff]
        %v538 = vld [vmem:[%s3 + $0x1a0] sm:$0xff]
        %v539 = vld [vmem:[%s3 + $0x1a8] sm:$0xff]
        %v540 = vld [vmem:[%s3 + $0x1b0] sm:$0xff]
        %v541 = vld [vmem:[%s3 + $0x1b8] sm:$0xff]
        %v542 = vld [vmem:[%s3 + $0x1c0] sm:$0xff]
        %v543 = vld [vmem:[%s3 + $0x1c8] sm:$0xff]
        %v544 = vld [vmem:[%s3 + $0x1d0] sm:$0xff]
        %v545 = vld [vmem:[%s3 + $0x1d8] sm:$0xff]
        %v546 = vld [vmem:[%s3 + $0x1e0] sm:$0xff]
        %v547 = vld [vmem:[%s3 + $0x1e8] sm:$0xff]
        %v548 = vld [vmem:[%s3 + $0x1f0] sm:$0xff]
        %v549 = vld [vmem:[%s3 + $0x1f8] sm:$0xff]
        %v550 = vld [vmem:[%s3 + $0x200] sm:$0xff]
        %v551 = vld [vmem:[%s3 + $0x208] sm:$0xff]
        %v552 = vld [vmem:[%s3 + $0x210] sm:$0xff]
        %v553 = vld [vmem:[%s3 + $0x218] sm:$0xff]
        %v554 = vld [vmem:[%s3 + $0x220] sm:$0xff]
        %v555 = vld [vmem:[%s3 + $0x228] sm:$0xff]
        %v556 = vld [vmem:[%s3 + $0x230] sm:$0xff]
        %v557 = vld [vmem:[%s3 + $0x238] sm:$0xff]
        %v558 = vld [vmem:[%s3 + $0x240] sm:$0xff]
        %v559 = vld [vmem:[%s3 + $0x248] sm:$0xff]
        %v560 = vld [vmem:[%s3 + $0x250] sm:$0xff]
        %v561 = vld [vmem:[%s3 + $0x258] sm:$0xff]
        %v562 = vld [vmem:[%s3 + $0x260] sm:$0xff]
        %v563 = vld [vmem:[%s3 + $0x268] sm:$0xff]
        %v564 = vld [vmem:[%s3 + $0x270] sm:$0xff]
        %v565 = vld [vmem:[%s3 + $0x278] sm:$0xff]
        %v566 = vld [vmem:[%s3 + $0x280] sm:$0xff]
        %v567 = vld [vmem:[%s3 + $0x288] sm:$0xff]
        %v568 = vld [vmem:[%s3 + $0x290] sm:$0xff]
        %v569 = vld [vmem:[%s3 + $0x298] sm:$0xff]
        %vm570 = vcmask 654336
        %v571 = vsel %vm570, %v482, 0
        %573 = vmatpush.msra.mxu0 %v516
        %574 = vmatpush.msra.mxu0 %v514
        %575 = vmatpush.msra.mxu0 %v512
        %576 = vmatpush.msra.mxu0 %v510
        %577 = vmatpush.msra.mxu0 %v508
        %578 = vmatpush.msra.mxu0 %v506
        %579 = vmatpush.msra.mxu0 %v504
        %580 = vmatpush.msra.mxu0 %v502
        %581 = vmatpush.msra.mxu0 %v500
        %582 = vmatpush.msra.mxu0 %v498
        %583 = vmatpush.msra.mxu0 %v496
        %584 = vmatpush.msra.mxu0 %v494
        %585 = vmatpush.msra.mxu0 %v492
        %586 = vmatpush.msra.mxu0 %v490
        %587 = vmatpush.msra.mxu0 %v488
        %588 = vmatpush.msra.mxu0 %v486
        %589 = vmatmul.f32.gmra.mxu0 %v484
        %v590 = vpop.f32.mrf.mxu0
        %v591 = vadd.f32 0.0, %v590
        %592 = vdwg.mxu0
        %593 = vmatpush.msra.mxu0 %v548
        %594 = vmatpush.msra.mxu0 %v546
        %595 = vmatpush.msra.mxu0 %v544
        %596 = vmatpush.msra.mxu0 %v542
        %597 = vmatpush.msra.mxu0 %v540
        %598 = vmatpush.msra.mxu0 %v538
        %599 = vmatpush.msra.mxu0 %v536
        %600 = vmatpush.msra.mxu0 %v534
        %601 = vmatpush.msra.mxu0 %v532
        %602 = vmatpush.msra.mxu0 %v530
        %603 = vmatpush.msra.mxu0 %v528
        %604 = vmatpush.msra.mxu0 %v526
        %605 = vmatpush.msra.mxu0 %v524
        %606 = vmatpush.msra.mxu0 %v522
        %607 = vmatpush.msra.mxu0 %v520
        %608 = vmatpush.msra.mxu0 %v518
        %609 = vmatmul.f32.gmra.mxu0 %v485
        %v610 = vpop.f32.mrf.mxu0
        %v611 = vadd.f32 %v591, %v610
        %612 = vdwg.mxu0
        %613 = vmatpush.msra.mxu0 0.0
        %614 = vmatpush.msra.mxu0 0.0
        %615 = vmatpush.msra.mxu0 0.0
        %616 = vmatpush.msra.mxu0 0.0
        %617 = vmatpush.msra.mxu0 0.0
        %618 = vmatpush.msra.mxu0 0.0
        %619 = vmatpush.msra.mxu0 %v568
        %620 = vmatpush.msra.mxu0 %v566
        %621 = vmatpush.msra.mxu0 %v564
        %622 = vmatpush.msra.mxu0 %v562
        %623 = vmatpush.msra.mxu0 %v560
        %624 = vmatpush.msra.mxu0 %v558
        %625 = vmatpush.msra.mxu0 %v556
        %626 = vmatpush.msra.mxu0 %v554
        %627 = vmatpush.msra.mxu0 %v552
        %628 = vmatpush.msra.mxu0 %v550
        %629 = vmatmul.f32.gmra.mxu0 %v571
        %v630 = vpop.f32.mrf.mxu0
        %v631 = vadd.f32 %v611, %v630
        %632 = vdwg.mxu0
        %633 = vmatpush.msra.mxu0 %v517
        %634 = vmatpush.msra.mxu0 %v515
        %635 = vmatpush.msra.mxu0 %v513
        %636 = vmatpush.msra.mxu0 %v511
        %637 = vmatpush.msra.mxu0 %v509
        %638 = vmatpush.msra.mxu0 %v507
        %639 = vmatpush.msra.mxu0 %v505
        %640 = vmatpush.msra.mxu0 %v503
        %641 = vmatpush.msra.mxu0 %v501
        %642 = vmatpush.msra.mxu0 %v499
        %643 = vmatpush.msra.mxu0 %v497
        %644 = vmatpush.msra.mxu0 %v495
        %645 = vmatpush.msra.mxu0 %v493
        %646 = vmatpush.msra.mxu0 %v491
        %647 = vmatpush.msra.mxu0 %v489
        %648 = vmatpush.msra.mxu0 %v487
        %649 = vmatmul.f32.gmra.mxu0 %v484
        %v650 = vpop.f32.mrf.mxu0
        %v651 = vadd.f32 0.0, %v650
        %652 = vdwg.mxu0
        %653 = vmatpush.msra.mxu0 %v549
        %654 = vmatpush.msra.mxu0 %v547
        %655 = vmatpush.msra.mxu0 %v545
        %656 = vmatpush.msra.mxu0 %v543
        %657 = vmatpush.msra.mxu0 %v541
        %658 = vmatpush.msra.mxu0 %v539
        %659 = vmatpush.msra.mxu0 %v537
        %660 = vmatpush.msra.mxu0 %v535
        %661 = vmatpush.msra.mxu0 %v533
        %662 = vmatpush.msra.mxu0 %v531
        %663 = vmatpush.msra.mxu0 %v529
        %664 = vmatpush.msra.mxu0 %v527
        %665 = vmatpush.msra.mxu0 %v525
        %666 = vmatpush.msra.mxu0 %v523
        %667 = vmatpush.msra.mxu0 %v521
        %668 = vmatpush.msra.mxu0 %v519
        %669 = vmatmul.f32.gmra.mxu0 %v485
        %v670 = vpop.f32.mrf.mxu0
        %v671 = vadd.f32 %v651, %v670
        %672 = vdwg.mxu0
        %673 = vmatpush.msra.mxu0 0.0
        %674 = vmatpush.msra.mxu0 0.0
        %675 = vmatpush.msra.mxu0 0.0
        %676 = vmatpush.msra.mxu0 0.0
        %677 = vmatpush.msra.mxu0 0.0
        %678 = vmatpush.msra.mxu0 0.0
        %679 = vmatpush.msra.mxu0 %v569
        %680 = vmatpush.msra.mxu0 %v567
        %681 = vmatpush.msra.mxu0 %v565
        %682 = vmatpush.msra.mxu0 %v563
        %683 = vmatpush.msra.mxu0 %v561
        %684 = vmatpush.msra.mxu0 %v559
        %685 = vmatpush.msra.mxu0 %v557
        %686 = vmatpush.msra.mxu0 %v555
        %687 = vmatpush.msra.mxu0 %v553
        %688 = vmatpush.msra.mxu0 %v551
        %689 = vmatmul.f32.gmra.mxu0 %v571
        %v690 = vpop.f32.mrf.mxu0
        %v691 = vadd.f32 %v671, %v690
        %692 = vdwg.mxu0
        %695 = vrot.lane.b32.xlu0 %v631, 56
        %v696 = vpop.permute.xlu0 %695
        %697 = vrot.lane.b32.xlu0 %v691, 56
        %v698 = vpop.permute.xlu0 %697
        %vm699 = vcmask 457728
        %v700 = vsel %vm699, %v696, %v698
        %v702 = vmax.f32 %v631, %v700
        %v703 = vld [vmem:[%s4] sm:$0x1]
        %v705 = vperm.slane %v703, 0
        %v707 = vadd.f32 %v702, %v705
        %v708 = vmax.f32 %v707, 0.0
        %vm709 = vcmask 586752
        %710 = vst.msk [vmem:[#allocation3] sm:$0x3f] %vm709, %v708
        %v711 = vld [vmem:[#allocation3] ss:$8 sm:$0x1]
        %s712 = scalar_lea.vmem [#allocation3], 1
        %v713 = vld [vmem:[%s712] ss:$8 sm:$0x1]
        %v714 = vmax.f32 %v711, %v713
        %v715 = vadd.f32 %v714, 0.0
        %s716 = scalar_lea.vmem [#allocation3], 2
        %v717 = vld [vmem:[%s716] ss:$8 sm:$0x1]
        %s718 = scalar_lea.vmem [#allocation3], 3
        %v719 = vld [vmem:[%s718] ss:$8 sm:$0x1]
        %v720 = vmax.f32 %v717, %v719
        %v721 = vadd.f32 %v715, %v720
        %v722 = vadd.f32 %v721, 0.0
        %724 = vrot.lane.b32.xlu0 %v721, 92
        %v725 = vpop.permute.xlu0 %724
        %v727 = vadd.f32 %v722, %v725
        %v728 = vld [vmem:[%s5] sm:$0xff]
        %v729 = vld [vmem:[%s5 + $0x8] sm:$0xff]
        %v730 = vld [vmem:[%s5 + $0x10] sm:$0xff]
        %v731 = vld [vmem:[%s5 + $0x18] sm:$0xff]
        %v732 = vld [vmem:[%s5 + $0x20] sm:$0xf]
        %v733 = vld [vmem:[%s6] sm:$0x1]
        %vm734 = vcmask 293888
        %v736 = vsel %vm734, %v727, 0
        %vm738 = vcmask 1043456
        %v740 = vsel %vm738, %v732, 0
        %742 = vmatpush.msra.mxu0 0.0
        %743 = vmatpush.msra.mxu0 0.0
        %744 = vmatpush.msra.mxu0 0.0
        %745 = vmatpush.msra.mxu0 0.0
        %746 = vmatpush.msra.mxu0 0.0
        %747 = vmatpush.msra.mxu0 0.0
        %748 = vmatpush.msra.mxu0 0.0
        %749 = vmatpush.msra.mxu0 0.0
        %750 = vmatpush.msra.mxu0 0.0
        %751 = vmatpush.msra.mxu0 0.0
        %752 = vmatpush.msra.mxu0 0.0
        %753 = vmatpush.msra.mxu0 %v740
        %754 = vmatpush.msra.mxu0 %v731
        %755 = vmatpush.msra.mxu0 %v730
        %756 = vmatpush.msra.mxu0 %v729
        %757 = vmatpush.msra.mxu0 %v728
        %758 = vmatmul.f32.gmra.mxu0 %v736
        %v759 = vpop.f32.mrf.mxu0
        %v760 = vadd.f32 %v733, %v759
        %761 = vdwg.mxu0
        %vm762 = vcmask 8192
        %763 = vst.msk [vmem:[%s271] sm:$0x1] %vm762, %v760
        %s764 = sand.u32 %s181, 1
        %s765 = scalar_lea.sflag [#allocation5], %s764
        %s766 = sand.u32 %s181, 1
        %s767 = scalar_lea.vmem [#allocation4], %s766
        // Predicated region
        $region49: #{net01_forward.1} parent=47 // pred_check
          %p768 = pneg %p191
        $region50: #{net01_forward.1} parent=47 // pred_check_branch
          %770 = sbr.rel (%p768) target = $region52
        $region51: #{net01_forward.1} parent=47 // pred_region
          %772 = vsyncadd %s765, 0
          %s773 = scalar_lea.hbm %s7, %s21
          %s775 = sshll.u32 %s767, 4
          %s776 = int_to_ptr.vmem [resolvable:$true] %s775
          %s777 = sshll.u32 %s773, 4
          %s778 = int_to_ptr.hbm [resolvable:$true] %s777
          %780 = dma.vmem_to_hbm [thread:$0]  %s776, 16, %s778, %s765
        $region52: #{net01_forward.1} parent=47 // pred_fallthru
          _
      $region48: #{net01_forward.1} parent=5 // pred_fallthru
        _
      %p781 = scmp.le.s32.totalorder 2, %s16
      // Predicated region
      $region53: #{net01_forward.1} parent=5 // pred_check
        %p782 = pneg %p781
      $region54: #{net01_forward.1} parent=5 // pred_check_branch
        %784 = sbr.rel (%p782) target = $region56
      $region55: #{net01_forward.1} parent=5 // pred_region
        %s785 = ssub.s32 %s16, 2
        // Predicated region
        $region57: #{net01_forward.1} parent=55 // pred_check
          %p786 = pneg %p197
        $region58: #{net01_forward.1} parent=55 // pred_check_branch
          %788 = sbr.rel (%p786) target = $region60
        $region59: #{net01_forward.1} parent=55 // pred_region
          %s789 = sand.u32 %s182, 1
          %s790 = scalar_lea.sflag [#allocation5], %s789
          %s791 = sand.u32 %s182, 1
          %s792 = scalar_lea.vmem [#allocation4], %s791
          %794 = dma.done %s790, 16
        $region60: #{net01_forward.1} parent=55 // pred_fallthru
          _
      $region56: #{net01_forward.1} parent=5 // pred_fallthru
        _
    $region6: #{net01_forward.1} parent=1 // loop_footer
      %s20 = sadd.s32 1, %s16
    $region7: #{net01_forward.1} parent=1 // loop_footer_branch
      %15 = sbr.rel target = $region3
    $region8: #{net01_forward.1} parent=1 // loop_exit
      _
    %795 = vsyncpa [#allocation5], 1
    %s796 = scalar_lea.sflag [#allocation5], 1
    %797 = vsyncpa %s796, 1

</llo_original>
